<compile_context>
chip_gen: v7x
topology: tpu7x:2x2x1
jax: 0.10.0
libtpu: 0.0.40
codegen_flags: <defaults>
</compile_context>

<pallas_src>
import jax
import jax.numpy as jnp
from jax.experimental import pallas as pl
from jax.experimental.pallas import tpu as pltpu

EPS = 1e-5

# Matmul-input / im2col-scratch dtype. Use jnp.bfloat16 for production channel counts
# (MXU-native inputs on v5e/v6e/v7x, half the im2col-scratch and weight traffic); f32 is
# kept here so the tiny correctness test matches the f32 reference tightly. Accumulation
# is always f32 (preferred_element_type); BN/ReLU stay f32 (v5e has no bf16 VPU/EUP).
MM_DTYPE = jnp.float32

# TODO(synk): for production U-Net feature maps, additionally tile the grid over H
# row-blocks (1-row halo fetched via manual make_async_copy) so the per-step footprint
# stays under v7x's 64 MiB even at stage-1 sizes; the per-tile-stats + exact combine
# below already supports any number of tiles.
# TODO(synk): pad channels to multiples of 128 (256-aligned K/Co on v6e/v7x) for
# unmasked lane stores / full MXU passes, masking padded lanes out of the BN statistics.


# ----------------------------- in-kernel helpers ------------------------------------

def _build_im2col(act, colw_ref):
    """W-direction im2col of the H-padded activation.

    act: (Hp, Wp, C), already cast to colw_ref.dtype. colw_ref: (Hp+2, Wp, 3*C) with
    column order dx*C + ci. Only the thin H-halo rows and W-boundary columns are zeroed;
    the center plane is a fully W-aligned store (no full-buffer zero fill).
    """
    Hp, Wp, C = act.shape
    dt = colw_ref.dtype
    zrow = jnp.zeros((1, Wp, 3 * C), dt)
    colw_ref[0:1, :, :] = zrow                                   # top H halo
    colw_ref[Hp + 1:Hp + 2, :, :] = zrow                         # bottom H halo
    zcol = jnp.zeros((Hp, 1, C), dt)
    colw_ref[1:Hp + 1, :, C:2 * C] = act                         # dx = 1 (center)
    colw_ref[1:Hp + 1, 1:Wp, 0:C] = act[:, 0:Wp - 1, :]          # dx = 0 (left)
    colw_ref[1:Hp + 1, 0:1, 0:C] = zcol
    colw_ref[1:Hp + 1, 0:Wp - 1, 2 * C:3 * C] = act[:, 1:Wp, :]  # dx = 2 (right)
    colw_ref[1:Hp + 1, Wp - 1:Wp, 2 * C:3 * C] = zcol


def _conv_rows(colw_ref, w_ref, acc_ref):
    """3x3 conv as 3 row matmuls (K = 3*C) accumulated into a VMEM scratch."""
    Hp = colw_ref.shape[0] - 2
    Wp = colw_ref.shape[1]
    K = colw_ref.shape[2]
    M = Hp * Wp
    for dy in range(3):                 # static unroll; H shift is a clean plane read
        lhs = colw_ref[dy:dy + Hp, :, :].reshape(M, K)
        contrib = jnp.dot(lhs, w_ref[dy * K:(dy + 1) * K, :],
                          preferred_element_type=jnp.float32)
        if dy == 0:
            acc_ref[...] = contrib
        else:
            acc_ref[...] += contrib


def _tile_stats(acc, stats_ref):
    """Per-tile BN partials: row 0 = tile mean, row 1 = centered M2 (sum sq dev)."""
    m = acc.shape[0]
    mean = jnp.sum(acc, axis=0, keepdims=True) * (1.0 / m)
    d = acc - mean
    stats_ref[0:1, :] = mean
    stats_ref[1:2, :] = jnp.sum(d * d, axis=0, keepdims=True)


# ----------------------------------- kernels -----------------------------------------

def pool_conv1_kernel(x_ref, w_ref, y_ref, stats_ref, hmax_ref, colw_ref, acc_ref):
    H, W, _ = x_ref.shape
    Hp, Wp = H // 2, W // 2
    Cmid = w_ref.shape[1]

    # MaxPool2d(2): H-pair max first (dense in W/C), then one pair of W-strided reads
    # on the half-sized intermediate (instead of four doubly-strided reads).
    hmax_ref[...] = jnp.maximum(x_ref[pl.ds(0, Hp, stride=2), :, :],
                                x_ref[pl.ds(1, Hp, stride=2), :, :])
    pooled = jnp.maximum(hmax_ref[:, pl.ds(0, Wp, stride=2), :],
                         hmax_ref[:, pl.ds(1, Wp, stride=2), :])

    # Conv1 (bias omitted: cancelled exactly by the BN mean subtraction in pass 2).
    _build_im2col(pooled.astype(colw_ref.dtype), colw_ref)
    _conv_rows(colw_ref, w_ref, acc_ref)

    acc = acc_ref[...]
    _tile_stats(acc, stats_ref)
    y_ref[...] = acc.reshape(Hp, Wp, Cmid)


def bn_conv2_kernel(y1_ref, scale_ref, shift_ref, w_ref, y_ref, stats_ref,
                    colw_ref, acc_ref):
    Hp, Wp, _ = y1_ref.shape
    Cout = w_ref.shape[1]

    # BN1 (folded scale/shift from the cross-tile reduction) + ReLU, in f32.
    a1 = jnp.maximum(y1_ref[...] * scale_ref[...] + shift_ref[...], 0.0)

    _build_im2col(a1.astype(colw_ref.dtype), colw_ref)
    _conv_rows(colw_ref, w_ref, acc_ref)

    acc = acc_ref[...]
    _tile_stats(acc, stats_ref)
    y_ref[...] = acc.reshape(Hp, Wp, Cout)


def bn_relu_kernel(y_ref, scale_ref, shift_ref, out_ref):
    out_ref[...] = jnp.maximum(y_ref[...] * scale_ref[...] + shift_ref[...], 0.0)


# --------------------------------- host wrapper ---------------------------------------

def _combine_tile_stats(stats, count_per_tile):
    """Exact cross-tile BN stats (law of total variance) from per-tile (mean, M2)."""
    mean_t = stats[:, 0, :]                       # (T, C)
    m2_t = stats[:, 1, :]                         # (T, C)
    n_tiles = stats.shape[0]
    total = n_tiles * count_per_tile
    mu = jnp.mean(mean_t, axis=0)                 # equal-size tiles
    m2 = jnp.sum(m2_t, axis=0) + count_per_tile * jnp.sum((mean_t - mu) ** 2, axis=0)
    return mu, m2 / total


def _bn_scale_shift(mu, var, gamma, beta):
    inv = jax.lax.rsqrt(var + EPS)
    scale = gamma * inv
    shift = beta - mu * scale
    return scale.reshape(1, -1).astype(jnp.float32), shift.reshape(1, -1).astype(jnp.float32)


def _vmem_limit(block_bytes, scratch_bytes):
    # Double-buffered in/out blocks + region-0 scratch, 2x headroom, clamped to
    # [32 MiB, 96 MiB]. (Keep the cap near ~56 MiB when tuning tile sizes for v7x's
    # 64 MiB VMEM; the toy shapes here resolve to the 32 MiB floor.)
    est = 2 * block_bytes + scratch_bytes
    return int(min(96 * 2 ** 20, max(32 * 2 ** 20, 2 * est)))


def down_forward(x_nchw, p):
    N, Cin, H, W = x_nchw.shape
    Hp, Wp = H // 2, W // 2
    Cmid = p["w1"].shape[-1]
    Cout = p["w2"].shape[-1]
    m_tile = Hp * Wp
    f32b = 4
    mmb = jnp.dtype(MM_DTYPE).itemsize

    # Flatten HWIO conv weights to ((dy*3+dx)*C + ci, co). Conv biases are NOT passed
    # to the kernels (training-mode BN cancels them exactly).
    w1f = p["w1"].reshape(9 * Cin, Cmid).astype(MM_DTYPE)
    w2f = p["w2"].reshape(9 * Cmid, Cout).astype(MM_DTYPE)

    # NCHW -> NHWC at the module boundary only (an NHWC end-to-end model skips this).
    x = jnp.transpose(x_nchw, (0, 2, 3, 1)).astype(jnp.float32)

    # ---------------- pass 1: maxpool + conv1 (+ per-tile BN1 partials) ----------------
    blk1 = (H * W * Cin + Hp * Wp * Cmid + 2 * Cmid) * f32b + 9 * Cin * Cmid * mmb
    scr1 = Hp * W * Cin * f32b + (Hp + 2) * Wp * 3 * Cin * mmb + m_tile * Cmid * f32b
    bytes1 = (N * H * W * Cin + N * Hp * Wp * Cmid + N * 2 * Cmid) * f32b + 9 * Cin * Cmid * mmb
    y1pre, stats1 = pl.pallas_call(
        pool_conv1_kernel,
        out_shape=(jax.ShapeDtypeStruct((N, Hp, Wp, Cmid), jnp.float32),
                   jax.ShapeDtypeStruct((N, 2, Cmid), jnp.float32)),
        grid=(N,),
        in_specs=[
            pl.BlockSpec((None, H, W, Cin), lambda n: (n, 0, 0, 0)),
            pl.BlockSpec((9 * Cin, Cmid), lambda n: (0, 0)),
        ],
        out_specs=(
            pl.BlockSpec((None, Hp, Wp, Cmid), lambda n: (n, 0, 0, 0)),
            pl.BlockSpec((None, 2, Cmid), lambda n: (n, 0, 0)),
        ),
        scratch_shapes=[
            pltpu.VMEM((Hp, W, Cin), jnp.float32),            # H-pair max intermediate
            pltpu.VMEM((Hp + 2, Wp, 3 * Cin), MM_DTYPE),      # W-im2col (MM_DTYPE)
            pltpu.VMEM((m_tile, Cmid), jnp.float32),          # conv accumulator
        ],
        compiler_params=pltpu.CompilerParams(
            dimension_semantics=("parallel",),
            vmem_limit_bytes=_vmem_limit(blk1, scr1)),
        cost_estimate=pl.CostEstimate(
            flops=2 * N * m_tile * 9 * Cin * Cmid + 3 * N * m_tile * Cin,
            transcendentals=0,
            bytes_accessed=bytes1),
    )(x, w1f)

    mu1, var1 = _combine_tile_stats(stats1, m_tile)
    scale1, shift1 = _bn_scale_shift(mu1, var1, p["g1"], p["bt1"])

    # ---------------- pass 2: BN1 + ReLU + conv2 (+ per-tile BN2 partials) -------------
    blk2 = (Hp * Wp * (Cmid + Cout) + 2 * Cout + 2 * Cmid) * f32b + 9 * Cmid * Cout * mmb
    scr2 = (Hp + 2) * Wp * 3 * Cmid * mmb + m_tile * Cout * f32b
    bytes2 = (N * Hp * Wp * (Cmid + Cout) + N * 2 * Cout + 2 * Cmid) * f32b + 9 * Cmid * Cout * mmb
    y2pre, stats2 = pl.pallas_call(
        bn_conv2_kernel,
        out_shape=(jax.ShapeDtypeStruct((N, Hp, Wp, Cout), jnp.float32),
                   jax.ShapeDtypeStruct((N, 2, Cout), jnp.float32)),
        grid=(N,),
        in_specs=[
            pl.BlockSpec((None, Hp, Wp, Cmid), lambda n: (n, 0, 0, 0)),
            pl.BlockSpec((1, Cmid), lambda n: (0, 0)),
            pl.BlockSpec((1, Cmid), lambda n: (0, 0)),
            pl.BlockSpec((9 * Cmid, Cout), lambda n: (0, 0)),
        ],
        out_specs=(
            pl.BlockSpec((None, Hp, Wp, Cout), lambda n: (n, 0, 0, 0)),
            pl.BlockSpec((None, 2, Cout), lambda n: (n, 0, 0)),
        ),
        scratch_shapes=[
            pltpu.VMEM((Hp + 2, Wp, 3 * Cmid), MM_DTYPE),     # W-im2col (MM_DTYPE)
            pltpu.VMEM((m_tile, Cout), jnp.float32),          # conv accumulator
        ],
        compiler_params=pltpu.CompilerParams(
            dimension_semantics=("parallel",),
            vmem_limit_bytes=_vmem_limit(blk2, scr2)),
        cost_estimate=pl.CostEstimate(
            flops=2 * N * m_tile * 9 * Cmid * Cout + 3 * N * m_tile * Cmid,
            transcendentals=0,
            bytes_accessed=bytes2),
    )(y1pre, scale1, shift1, w2f)

    mu2, var2 = _combine_tile_stats(stats2, m_tile)
    scale2, shift2 = _bn_scale_shift(mu2, var2, p["g2"], p["bt2"])

    # ---------------- pass 3: BN2 + ReLU (elementwise) ----------------
    blk3 = (2 * Hp * Wp * Cout + 2 * Cout) * f32b
    out = pl.pallas_call(
        bn_relu_kernel,
        out_shape=jax.ShapeDtypeStruct((N, Hp, Wp, Cout), jnp.float32),
        grid=(N,),
        in_specs=[
            pl.BlockSpec((None, Hp, Wp, Cout), lambda n: (n, 0, 0, 0)),
            pl.BlockSpec((1, Cout), lambda n: (0, 0)),
            pl.BlockSpec((1, Cout), lambda n: (0, 0)),
        ],
        out_specs=pl.BlockSpec((None, Hp, Wp, Cout), lambda n: (n, 0, 0, 0)),
        compiler_params=pltpu.CompilerParams(
            dimension_semantics=("parallel",),
            vmem_limit_bytes=_vmem_limit(blk3, 0)),
        cost_estimate=pl.CostEstimate(
            flops=3 * N * m_tile * Cout,
            transcendentals=0,
            bytes_accessed=2 * N * m_tile * Cout * f32b),
    )(y2pre, scale2, shift2)

    return jnp.transpose(out, (0, 3, 1, 2))  # NHWC -> NCHW


# --------------------------------- params & reference ----------------------------------

def init_params(key, cin, cmid, cout):
    k1, k2, k3, k4 = jax.random.split(key, 4)
    return dict(
        w1=jax.random.normal(k1, (3, 3, cin, cmid), jnp.float32) * (1.0 / (9 * cin)) ** 0.5,
        b1=jax.random.normal(k2, (cmid,), jnp.float32) * 0.05,   # used by the reference;
        g1=jnp.ones((cmid,), jnp.float32),                       # cancelled by BN in fwd
        bt1=jnp.zeros((cmid,), jnp.float32),
        w2=jax.random.normal(k3, (3, 3, cmid, cout), jnp.float32) * (1.0 / (9 * cmid)) ** 0.5,
        b2=jax.random.normal(k4, (cout,), jnp.float32) * 0.05,
        g2=jnp.ones((cout,), jnp.float32),
        bt2=jnp.zeros((cout,), jnp.float32),
    )


def ref_forward_nhwc(x, p):
    # pure-JAX reference (NHWC), including the conv biases, for correctness checking
    def bn_relu(y, g, b):
        mu = jnp.mean(y, axis=(0, 1, 2), keepdims=True)
        var = jnp.mean((y - mu) ** 2, axis=(0, 1, 2), keepdims=True)
        return jnp.maximum((y - mu) * jax.lax.rsqrt(var + EPS) * g + b, 0.0)

    N, H, W, C = x.shape
    pooled = jnp.max(x.reshape(N, H // 2, 2, W // 2, 2, C), axis=(2, 4))
    dn = ("NHWC", "HWIO", "NHWC")
    y = jax.lax.conv_general_dilated(pooled, p["w1"], (1, 1), "SAME",
                                     dimension_numbers=dn,
                                     precision=jax.lax.Precision.HIGHEST) + p["b1"]
    y = bn_relu(y, p["g1"], p["bt1"])
    y = jax.lax.conv_general_dilated(y, p["w2"], (1, 1), "SAME",
                                     dimension_numbers=dn,
                                     precision=jax.lax.Precision.HIGHEST) + p["b2"]
    y = bn_relu(y, p["g2"], p["bt2"])
    return y


if __name__ == "__main__":
    key = jax.random.PRNGKey(0)
    kx, kp = jax.random.split(key)

    N, Cin, H, W = 2, 4, 16, 16
    Cout = 8  # Down(4, 8): DoubleConv(4, 8) -> mid_channels = out_channels = 8

    x = jax.random.normal(kx, (N, Cin, H, W), jnp.float32)
    params = init_params(kp, Cin, Cout, Cout)

    out = down_forward(x, params)
    out = jax.block_until_ready(out)

    assert out.shape == (N, Cout, H // 2, W // 2), out.shape

    ref = ref_forward_nhwc(jnp.transpose(x, (0, 2, 3, 1)), params)
    ref = jnp.transpose(ref, (0, 3, 1, 2))
    max_err = float(jnp.max(jnp.abs(out - ref)))
    if max_err > 1e-2:
        raise AssertionError(f"kernel/reference mismatch, max abs err = {max_err}")

    print("KERNEL_OK")
</pallas_src>

<mosaic_0001>
module attributes {stable_mosaic.version = 11 : i64} {
  func.func @pool_conv1_kernel(%arg0: i32, %arg1: memref<1x16x16x4xf32, #tpu.memory_space<vmem>>, %arg2: memref<36x8xf32, #tpu.memory_space<vmem>>, %arg3: memref<1x8x8x8xf32, #tpu.memory_space<vmem>>, %arg4: memref<1x2x8xf32, #tpu.memory_space<vmem>>, %arg5: memref<8x16x4xf32, #tpu.memory_space<vmem>>, %arg6: memref<10x8x12xf32, #tpu.memory_space<vmem>>, %arg7: memref<64x8xf32, #tpu.memory_space<vmem>>) attributes {dimension_semantics = [#tpu.dimension_semantics<parallel>], iteration_bounds = array<i64: 2>, scalar_prefetch = 0 : i64, scratch_operands = 3 : i64, tpu.core_type = #tpu.core_type<tc>, window_params = [{transform_indices = @transform_0, window_bounds = array<i64: 1, 16, 16, 4>}, {pipeline_mode = #tpu.pipeline_mode<synchronous>, transform_indices = @transform_1, window_bounds = array<i64: 36, 8>}, {transform_indices = @transform_2, window_bounds = array<i64: 1, 8, 8, 8>}, {transform_indices = @transform_3, window_bounds = array<i64: 1, 2, 8>}]} {
    %c0 = arith.constant 0 : index
    %c0_0 = arith.constant 0 : index
    %c0_1 = arith.constant 0 : index
    %c0_2 = arith.constant 0 : index
    %0 = tpu.strided_load %arg1[%c0, %c0_0, %c0_1, %c0_2] {strides = array<i32: 1, 2, 1, 1>} : memref<1x16x16x4xf32, #tpu.memory_space<vmem>>, vector<1x8x16x4xf32>
    %1 = vector.shape_cast %0 : vector<1x8x16x4xf32> to vector<8x16x4xf32>
    %c0_3 = arith.constant 0 : index
    %c1 = arith.constant 1 : index
    %c0_4 = arith.constant 0 : index
    %c0_5 = arith.constant 0 : index
    %2 = tpu.strided_load %arg1[%c0_3, %c1, %c0_4, %c0_5] {strides = array<i32: 1, 2, 1, 1>} : memref<1x16x16x4xf32, #tpu.memory_space<vmem>>, vector<1x8x16x4xf32>
    %3 = vector.shape_cast %2 : vector<1x8x16x4xf32> to vector<8x16x4xf32>
    %4 = arith.maximumf %1, %3 : vector<8x16x4xf32>
    %c0_6 = arith.constant 0 : index
    %c0_7 = arith.constant 0 : index
    %c0_8 = arith.constant 0 : index
    %5 = vector.load %arg5[%c0_6, %c0_7, %c0_8] : memref<8x16x4xf32, #tpu.memory_space<vmem>>, vector<8x16x4xf32>
    tpu.vector_store %arg5[%c0_6, %c0_7, %c0_8], %4 {strides = array<i32>} : memref<8x16x4xf32, #tpu.memory_space<vmem>>, vector<8x16x4xf32>,
    %c0_9 = arith.constant 0 : index
    %c0_10 = arith.constant 0 : index
    %c0_11 = arith.constant 0 : index
    %6 = tpu.strided_load %arg5[%c0_9, %c0_10, %c0_11] {strides = array<i32: 1, 2, 1>} : memref<8x16x4xf32, #tpu.memory_space<vmem>>, vector<8x8x4xf32>
    %c0_12 = arith.constant 0 : index
    %c1_13 = arith.constant 1 : index
    %c0_14 = arith.constant 0 : index
    %7 = tpu.strided_load %arg5[%c0_12, %c1_13, %c0_14] {strides = array<i32: 1, 2, 1>} : memref<8x16x4xf32, #tpu.memory_space<vmem>>, vector<8x8x4xf32>
    %8 = arith.maximumf %6, %7 : vector<8x8x4xf32>
    %cst = arith.constant 0.000000e+00 : f32
    %9 = vector.broadcast %cst : f32 to vector<1x8x12xf32>
    %c0_15 = arith.constant 0 : index
    %c0_16 = arith.constant 0 : index
    %c0_17 = arith.constant 0 : index
    %10 = vector.load %arg6[%c0_15, %c0_16, %c0_17] : memref<10x8x12xf32, #tpu.memory_space<vmem>>, vector<1x8x12xf32>
    tpu.vector_store %arg6[%c0_15, %c0_16, %c0_17], %9 {strides = array<i32>} : memref<10x8x12xf32, #tpu.memory_space<vmem>>, vector<1x8x12xf32>,
    %c9 = arith.constant 9 : index
    %c0_18 = arith.constant 0 : index
    %c0_19 = arith.constant 0 : index
    %11 = vector.load %arg6[%c9, %c0_18, %c0_19] : memref<10x8x12xf32, #tpu.memory_space<vmem>>, vector<1x8x12xf32>
    tpu.vector_store %arg6[%c9, %c0_18, %c0_19], %9 {strides = array<i32>} : memref<10x8x12xf32, #tpu.memory_space<vmem>>, vector<1x8x12xf32>,
    %cst_20 = arith.constant 0.000000e+00 : f32
    %12 = vector.broadcast %cst_20 : f32 to vector<8x1x4xf32>
    %c1_21 = arith.constant 1 : index
    %c0_22 = arith.constant 0 : index
    %c4 = arith.constant 4 : index
    %13 = vector.load %arg6[%c1_21, %c0_22, %c4] : memref<10x8x12xf32, #tpu.memory_space<vmem>>, vector<8x8x4xf32>
    tpu.vector_store %arg6[%c1_21, %c0_22, %c4], %8 {strides = array<i32>} : memref<10x8x12xf32, #tpu.memory_space<vmem>>, vector<8x8x4xf32>,
    %14 = vector.extract_strided_slice %8 {offsets = [0, 0, 0], sizes = [8, 7, 4], strides = [1, 1, 1]} : vector<8x8x4xf32> to vector<8x7x4xf32>
    %c1_23 = arith.constant 1 : index
    %c1_24 = arith.constant 1 : index
    %c0_25 = arith.constant 0 : index
    %15 = vector.load %arg6[%c1_23, %c1_24, %c0_25] : memref<10x8x12xf32, #tpu.memory_space<vmem>>, vector<8x7x4xf32>
    tpu.vector_store %arg6[%c1_23, %c1_24, %c0_25], %14 {strides = array<i32>} : memref<10x8x12xf32, #tpu.memory_space<vmem>>, vector<8x7x4xf32>,
    %c1_26 = arith.constant 1 : index
    %c0_27 = arith.constant 0 : index
    %c0_28 = arith.constant 0 : index
    %16 = vector.load %arg6[%c1_26, %c0_27, %c0_28] : memref<10x8x12xf32, #tpu.memory_space<vmem>>, vector<8x1x4xf32>
    tpu.vector_store %arg6[%c1_26, %c0_27, %c0_28], %12 {strides = array<i32>} : memref<10x8x12xf32, #tpu.memory_space<vmem>>, vector<8x1x4xf32>,
    %17 = vector.extract_strided_slice %8 {offsets = [0, 1, 0], sizes = [8, 7, 4], strides = [1, 1, 1]} : vector<8x8x4xf32> to vector<8x7x4xf32>
    %c1_29 = arith.constant 1 : index
    %c0_30 = arith.constant 0 : index
    %c8 = arith.constant 8 : index
    %18 = vector.load %arg6[%c1_29, %c0_30, %c8] : memref<10x8x12xf32, #tpu.memory_space<vmem>>, vector<8x7x4xf32>
    tpu.vector_store %arg6[%c1_29, %c0_30, %c8], %17 {strides = array<i32>} : memref<10x8x12xf32, #tpu.memory_space<vmem>>, vector<8x7x4xf32>,
    %c1_31 = arith.constant 1 : index
    %c7 = arith.constant 7 : index
    %c8_32 = arith.constant 8 : index
    %19 = vector.load %arg6[%c1_31, %c7, %c8_32] : memref<10x8x12xf32, #tpu.memory_space<vmem>>, vector<8x1x4xf32>
    tpu.vector_store %arg6[%c1_31, %c7, %c8_32], %12 {strides = array<i32>} : memref<10x8x12xf32, #tpu.memory_space<vmem>>, vector<8x1x4xf32>,
    %c0_33 = arith.constant 0 : index
    %c0_34 = arith.constant 0 : index
    %c0_35 = arith.constant 0 : index
    %20 = vector.load %arg6[%c0_33, %c0_34, %c0_35] : memref<10x8x12xf32, #tpu.memory_space<vmem>>, vector<8x8x12xf32>
    %21 = vector.shape_cast %20 : vector<8x8x12xf32> to vector<64x12xf32>
    %c0_36 = arith.constant 0 : index
    %c0_37 = arith.constant 0 : index
    %22 = vector.load %arg2[%c0_36, %c0_37] : memref<36x8xf32, #tpu.memory_space<vmem>>, vector<12x8xf32>
    %cst_38 = arith.constant dense<0.000000e+00> : vector<64x8xf32>
    %23 = tpu.matmul %21, %22, %cst_38 {dimension_numbers = #tpu.dot_dimension_numbers<[1], [0], [0], [1], [0, 0, 1, 1], [], []>} : vector<64x12xf32>, vector<12x8xf32>, vector<64x8xf32> -> vector<64x8xf32>
    %c0_39 = arith.constant 0 : index
    %c0_40 = arith.constant 0 : index
    %24 = vector.load %arg7[%c0_39, %c0_40] : memref<64x8xf32, #tpu.memory_space<vmem>>, vector<64x8xf32>
    tpu.vector_store %arg7[%c0_39, %c0_40], %23 {strides = array<i32>} : memref<64x8xf32, #tpu.memory_space<vmem>>, vector<64x8xf32>,
    %c1_41 = arith.constant 1 : index
    %c0_42 = arith.constant 0 : index
    %c0_43 = arith.constant 0 : index
    %25 = vector.load %arg6[%c1_41, %c0_42, %c0_43] : memref<10x8x12xf32, #tpu.memory_space<vmem>>, vector<8x8x12xf32>
    %26 = vector.shape_cast %25 : vector<8x8x12xf32> to vector<64x12xf32>
    %c12 = arith.constant 12 : index
    %c0_44 = arith.constant 0 : index
    %27 = vector.load %arg2[%c12, %c0_44] : memref<36x8xf32, #tpu.memory_space<vmem>>, vector<12x8xf32>
    %cst_45 = arith.constant dense<0.000000e+00> : vector<64x8xf32>
    %28 = tpu.matmul %26, %27, %cst_45 {dimension_numbers = #tpu.dot_dimension_numbers<[1], [0], [0], [1], [0, 0, 1, 1], [], []>} : vector<64x12xf32>, vector<12x8xf32>, vector<64x8xf32> -> vector<64x8xf32>
    %c0_46 = arith.constant 0 : index
    %c0_47 = arith.constant 0 : index
    %29 = vector.load %arg7[%c0_46, %c0_47] : memref<64x8xf32, #tpu.memory_space<vmem>>, vector<64x8xf32>
    %30 = arith.addf %29, %28 : vector<64x8xf32>
    %c0_48 = arith.constant 0 : index
    %c0_49 = arith.constant 0 : index
    %31 = vector.load %arg7[%c0_48, %c0_49] : memref<64x8xf32, #tpu.memory_space<vmem>>, vector<64x8xf32>
    tpu.vector_store %arg7[%c0_48, %c0_49], %30 {strides = array<i32>} : memref<64x8xf32, #tpu.memory_space<vmem>>, vector<64x8xf32>,
    %c2 = arith.constant 2 : index
    %c0_50 = arith.constant 0 : index
    %c0_51 = arith.constant 0 : index
    %32 = vector.load %arg6[%c2, %c0_50, %c0_51] : memref<10x8x12xf32, #tpu.memory_space<vmem>>, vector<8x8x12xf32>
    %33 = vector.shape_cast %32 : vector<8x8x12xf32> to vector<64x12xf32>
    %c24 = arith.constant 24 : index
    %c0_52 = arith.constant 0 : index
    %34 = vector.load %arg2[%c24, %c0_52] : memref<36x8xf32, #tpu.memory_space<vmem>>, vector<12x8xf32>
    %cst_53 = arith.constant dense<0.000000e+00> : vector<64x8xf32>
    %35 = tpu.matmul %33, %34, %cst_53 {dimension_numbers = #tpu.dot_dimension_numbers<[1], [0], [0], [1], [0, 0, 1, 1], [], []>} : vector<64x12xf32>, vector<12x8xf32>, vector<64x8xf32> -> vector<64x8xf32>
    %c0_54 = arith.constant 0 : index
    %c0_55 = arith.constant 0 : index
    %36 = vector.load %arg7[%c0_54, %c0_55] : memref<64x8xf32, #tpu.memory_space<vmem>>, vector<64x8xf32>
    %37 = arith.addf %36, %35 : vector<64x8xf32>
    %c0_56 = arith.constant 0 : index
    %c0_57 = arith.constant 0 : index
    %38 = vector.load %arg7[%c0_56, %c0_57] : memref<64x8xf32, #tpu.memory_space<vmem>>, vector<64x8xf32>
    tpu.vector_store %arg7[%c0_56, %c0_57], %37 {strides = array<i32>} : memref<64x8xf32, #tpu.memory_space<vmem>>, vector<64x8xf32>,
    %c0_58 = arith.constant 0 : index
    %c0_59 = arith.constant 0 : index
    %39 = vector.load %arg7[%c0_58, %c0_59] : memref<64x8xf32, #tpu.memory_space<vmem>>, vector<64x8xf32>
    %cst_60 = arith.constant dense<0.000000e+00> : vector<8xf32>
    %40 = vector.multi_reduction <add>, %39, %cst_60 [0] : vector<64x8xf32> to vector<8xf32>
    %41 = vector.shape_cast %40 : vector<8xf32> to vector<1x8xf32>
    %cst_61 = arith.constant 1.562500e-02 : f32
    %42 = vector.broadcast %cst_61 : f32 to vector<1x8xf32>
    %43 = arith.mulf %41, %42 : vector<1x8xf32>
    %44 = vector.broadcast %43 : vector<1x8xf32> to vector<64x8xf32>
    %45 = arith.subf %39, %44 : vector<64x8xf32>
    %c0_62 = arith.constant 0 : index
    %c0_63 = arith.constant 0 : index
    %c0_64 = arith.constant 0 : index
    %46 = vector.load %arg4[%c0_62, %c0_63, %c0_64] : memref<1x2x8xf32, #tpu.memory_space<vmem>>, vector<1x1x8xf32>
    %47 = vector.shape_cast %46 : vector<1x1x8xf32> to vector<1x8xf32>
    %48 = vector.shape_cast %43 : vector<1x8xf32> to vector<1x1x8xf32>
    tpu.vector_store %arg4[%c0_62, %c0_63, %c0_64], %48 {strides = array<i32>} : memref<1x2x8xf32, #tpu.memory_space<vmem>>, vector<1x1x8xf32>,
    %49 = arith.mulf %45, %45 : vector<64x8xf32>
    %cst_65 = arith.constant dense<0.000000e+00> : vector<8xf32>
    %50 = vector.multi_reduction <add>, %49, %cst_65 [0] : vector<64x8xf32> to vector<8xf32>
    %51 = vector.shape_cast %50 : vector<8xf32> to vector<1x8xf32>
    %c0_66 = arith.constant 0 : index
    %c1_67 = arith.constant 1 : index
    %c0_68 = arith.constant 0 : index
    %52 = vector.load %arg4[%c0_66, %c1_67, %c0_68] : memref<1x2x8xf32, #tpu.memory_space<vmem>>, vector<1x1x8xf32>
    %53 = vector.shape_cast %52 : vector<1x1x8xf32> to vector<1x8xf32>
    %54 = vector.shape_cast %51 : vector<1x8xf32> to vector<1x1x8xf32>
    tpu.vector_store %arg4[%c0_66, %c1_67, %c0_68], %54 {strides = array<i32>} : memref<1x2x8xf32, #tpu.memory_space<vmem>>, vector<1x1x8xf32>,
    %55 = vector.shape_cast %39 : vector<64x8xf32> to vector<8x8x8xf32>
    %c0_69 = arith.constant 0 : index
    %c0_70 = arith.constant 0 : index
    %c0_71 = arith.constant 0 : index
    %c0_72 = arith.constant 0 : index
    %56 = vector.load %arg3[%c0_69, %c0_70, %c0_71, %c0_72] : memref<1x8x8x8xf32, #tpu.memory_space<vmem>>, vector<1x8x8x8xf32>
    %57 = vector.shape_cast %56 : vector<1x8x8x8xf32> to vector<8x8x8xf32>
    %58 = vector.shape_cast %55 : vector<8x8x8xf32> to vector<1x8x8x8xf32>
    tpu.vector_store %arg3[%c0_69, %c0_70, %c0_71, %c0_72], %58 {strides = array<i32>} : memref<1x8x8x8xf32, #tpu.memory_space<vmem>>, vector<1x8x8x8xf32>,
    return
  }
  func.func @transform_0(%arg0: i32) -> (i32, i32, i32, i32) {
    %c0_i32 = arith.constant 0 : i32
    %c0_i32_0 = arith.constant 0 : i32
    %c0_i32_1 = arith.constant 0 : i32
    %c0_i32_2 = arith.constant 0 : i32
    return %arg0, %c0_i32, %c0_i32_0, %c0_i32_1 : i32, i32, i32, i32
  }
  func.func @transform_1(%arg0: i32) -> (i32, i32) {
    %c0_i32 = arith.constant 0 : i32
    %c0_i32_0 = arith.constant 0 : i32
    %c0_i32_1 = arith.constant 0 : i32
    return %c0_i32, %c0_i32_0 : i32, i32
  }
  func.func @transform_2(%arg0: i32) -> (i32, i32, i32, i32) {
    %c0_i32 = arith.constant 0 : i32
    %c0_i32_0 = arith.constant 0 : i32
    %c0_i32_1 = arith.constant 0 : i32
    %c0_i32_2 = arith.constant 0 : i32
    return %arg0, %c0_i32, %c0_i32_0, %c0_i32_1 : i32, i32, i32, i32
  }
  func.func @transform_3(%arg0: i32) -> (i32, i32, i32) {
    %c0_i32 = arith.constant 0 : i32
    %c0_i32_0 = arith.constant 0 : i32
    %c0_i32_1 = arith.constant 0 : i32
    return %arg0, %c0_i32, %c0_i32_0 : i32, i32, i32
  }
}

</mosaic_0001>

<llo_original>
// kernel: tpu_custom_call.1
$region0: #{tpu_custom_call.1}
  #allocation0 [shape = 'u32[]', space=smem, size = 0x4, offset = 0x4, fixed_abs, tag = 'smem constant byte address 0x4 - core index']
  #allocation1 [shape = 'u32[144,128]{1,0:T(1,128)}', space=vmem, size = 0x12000, scoped, tag = 'internal scratch']
  #allocation2 [shape = 'f32[8,16,4]{2,1,0:T(8,128)}', space=vmem, size = 0x10000, scoped, tag = 'scratch operand']
  #allocation3 [shape = 'f32[10,8,12]{2,1,0:T(8,128)}', space=vmem, size = 0xa000, scoped, tag = 'scratch operand']
  #allocation4 [shape = 'f32[64,8]{1,0:T(8,128)}', space=vmem, size = 0x8000, scoped, tag = 'scratch operand']
  %s0 = inlined_call_operand.vmem [shape: f32[2,16,16,4], index: 0, kind: input, shape index: {}]
  %s1 = inlined_call_operand.vmem [shape: f32[36,8], index: 1, kind: input, shape index: {}]
  %s2 = inlined_call_operand.hbm [shape: f32[2,8,8,8], index: 2, kind: output, shape index: {0}]
  %s3 = inlined_call_operand.hbm [shape: f32[2,2,8], index: 3, kind: output, shape index: {1}]
  %4 = xla_tuple %s2, %s3
  %s5 = sld [smem:[#allocation0]]
  $region49: #{tpu_custom_call.1} parent=0
    _
  %s7 = ssub.s32 1, %s5
  %s8 = scalar_select 0, %s7, %s5
  $region1: #{tpu_custom_call.1} parent=0
    #allocation5 [shape = 'u8[65536]{0}', space=vmem, size = 0x10000, scoped, tag = 'output window, operand 0']
    #allocation6 [shape = 's32[2]{0}', space=sflag, size = 0x8, scoped, tag = 'scoped memory for tpu_custom_call.1']
    #allocation7 [shape = 'u8[2048]{0}', space=vmem, size = 0x800, scoped, tag = 'output window, operand 1']
    #allocation8 [shape = 's32[2]{0}', space=sflag, size = 0x8, scoped, tag = 'scoped memory for tpu_custom_call.1']
    %9 = vsyncpa [#allocation6], 0
    %s10 = scalar_lea.sflag [#allocation6], 1
    %11 = vsyncpa %s10, 0
    %12 = vsyncpa [#allocation8], 0
    %s13 = scalar_lea.sflag [#allocation8], 1
    %14 = vsyncpa %s13, 0
    loop: start=0, step=1, limit=4
    $region2: #{tpu_custom_call.1} parent=1 // loop_pre_header
      _
    $region3: #{tpu_custom_call.1} parent=1 // loop_header
      %s16 = sphi 0, %s20
      %p17 = scmp.ge.s32.totalorder %s16, 4
      %s26 = sphi 0, %s28
      %s29 = sphi 0, %s26
      %s30 = sphi 0, %s29
      %s46 = sphi 0, %s30
      %s50 = sphi 0, %s50
      %s52 = sphi 0, %s50
      %s53 = sphi 0, %s52
      %s67 = sphi 0, %s53
      %s73 = sphi 0, %s75
      %s76 = sphi 0, %s73
      %s77 = sphi 0, %s76
      %s93 = sphi 0, %s77
      %s99 = sphi 0, %s101
      %s102 = sphi 0, %s99
      %s103 = sphi 0, %s102
      %s119 = sphi 0, %s103
    $region4: #{tpu_custom_call.1} parent=1 // loop_header_branch
      %19 = sbr.rel (%p17) target = $region8
    $region5: #{tpu_custom_call.1} parent=1 // loop_body
      %s21 = ssub.s32 %s16, 1
      %s22 = ssub.s32 %s16, 2
      %s23 = sadd.s32 %s16, 1
      %s24 = ssub.s32 %s16, %s23
      %p25 = scmp.eq.s32.totalorder %s24, 0
      %s27 = sadd.s32 %s26, 1
      %s28 = scalar_select %p25, %s26, %s27
      %p31 = pneg %p25
      %p32 = scmp.eq.s32.totalorder %s16, 1
      %p33 = por %p31, %p32
      %p34 = scmp.ne.s32.totalorder %s26, %s29
      %p35 = scmp.eq.s32.totalorder %s16, 0
      %p36 = por %p34, %p35
      %p37 = scmp.ne.s32.totalorder %s26, %s29
      %p38 = scmp.eq.s32.totalorder %s21, 1
      %p39 = por %p37, %p38
      %p40 = scmp.ne.s32.totalorder %s29, %s30
      %p41 = scmp.eq.s32.totalorder %s21, 0
      %p42 = por %p40, %p41
      %p43 = scmp.ne.s32.totalorder %s29, %s30
      %p44 = scmp.eq.s32.totalorder %s22, 1
      %p45 = por %p43, %p44
      %p47 = scmp.ne.s32.totalorder %s30, %s46
      %p48 = scmp.eq.s32.totalorder %s22, 0
      %p49 = por %p47, %p48
      %s51 = sadd.s32 %s50, 1
      %p54 = scmp.eq.s32.totalorder %s16, 1
      %p55 = scmp.ne.s32.totalorder %s50, %s52
      %p56 = scmp.eq.s32.totalorder %s16, 0
      %p57 = por %p55, %p56
      %p58 = scmp.ne.s32.totalorder %s50, %s52
      %p59 = scmp.eq.s32.totalorder %s21, 1
      %p60 = por %p58, %p59
      %p61 = scmp.ne.s32.totalorder %s52, %s53
      %p62 = scmp.eq.s32.totalorder %s21, 0
      %p63 = por %p61, %p62
      %p64 = scmp.ne.s32.totalorder %s52, %s53
      %p65 = scmp.eq.s32.totalorder %s22, 1
      %p66 = por %p64, %p65
      %p68 = scmp.ne.s32.totalorder %s53, %s67
      %p69 = scmp.eq.s32.totalorder %s22, 0
      %p70 = por %p68, %p69
      %s71 = ssub.s32 %s16, %s23
      %p72 = scmp.eq.s32.totalorder %s71, 0
      %s74 = sadd.s32 %s73, 1
      %s75 = scalar_select %p72, %s73, %s74
      %p78 = pneg %p72
      %p79 = scmp.eq.s32.totalorder %s16, 1
      %p80 = por %p78, %p79
      %p81 = scmp.ne.s32.totalorder %s73, %s76
      %p82 = scmp.eq.s32.totalorder %s16, 0
      %p83 = por %p81, %p82
      %p84 = scmp.ne.s32.totalorder %s73, %s76
      %p85 = scmp.eq.s32.totalorder %s21, 1
      %p86 = por %p84, %p85
      %p87 = scmp.ne.s32.totalorder %s76, %s77
      %p88 = scmp.eq.s32.totalorder %s21, 0
      %p89 = por %p87, %p88
      %p90 = scmp.ne.s32.totalorder %s76, %s77
      %p91 = scmp.eq.s32.totalorder %s22, 1
      %p92 = por %p90, %p91
      %p94 = scmp.ne.s32.totalorder %s77, %s93
      %p95 = scmp.eq.s32.totalorder %s22, 0
      %p96 = por %p94, %p95
      %s97 = ssub.s32 %s16, %s23
      %p98 = scmp.eq.s32.totalorder %s97, 0
      %s100 = sadd.s32 %s99, 1
      %s101 = scalar_select %p98, %s99, %s100
      %p104 = pneg %p98
      %p105 = scmp.eq.s32.totalorder %s16, 1
      %p106 = por %p104, %p105
      %p107 = scmp.ne.s32.totalorder %s99, %s102
      %p108 = scmp.eq.s32.totalorder %s16, 0
      %p109 = por %p107, %p108
      %p110 = scmp.ne.s32.totalorder %s99, %s102
      %p111 = scmp.eq.s32.totalorder %s21, 1
      %p112 = por %p110, %p111
      %p113 = scmp.ne.s32.totalorder %s102, %s103
      %p114 = scmp.eq.s32.totalorder %s21, 0
      %p115 = por %p113, %p114
      %p116 = scmp.ne.s32.totalorder %s102, %s103
      %p117 = scmp.eq.s32.totalorder %s22, 1
      %p118 = por %p116, %p117
      %p120 = scmp.ne.s32.totalorder %s103, %s119
      %p121 = scmp.eq.s32.totalorder %s22, 0
      %p122 = por %p120, %p121
      %p123 = scmp.le.s32.totalorder 1, %s16
      %p124 = scmp.lt.s32.totalorder %s16, 3
      %p125 = pnand %p123, %p124
      %p126 = pneg %p125
      // Predicated region
      $region9: #{tpu_custom_call.1} parent=5 // pred_check
        _
      $region10: #{tpu_custom_call.1} parent=5 // pred_check_branch
        %128 = sbr.rel (%p125) target = $region12
      $region11: #{tpu_custom_call.1} parent=5 // pred_region
        %s129 = ssub.s32 %s16, 1
        // Predicated region
        $region13: #{tpu_custom_call.1} parent=11 // pred_check
          %p130 = pneg %p63
        $region14: #{tpu_custom_call.1} parent=11 // pred_check_branch
          %132 = sbr.rel (%p130) target = $region16
        $region15: #{tpu_custom_call.1} parent=11 // pred_region
          _
        $region16: #{tpu_custom_call.1} parent=11 // pred_fallthru
          _
      $region12: #{tpu_custom_call.1} parent=5 // pred_fallthru
        _
      %p133 = scmp.lt.s32.totalorder %s16, 2
      // Predicated region
      $region17: #{tpu_custom_call.1} parent=5 // pred_check
        %p134 = pneg %p133
      $region18: #{tpu_custom_call.1} parent=5 // pred_check_branch
        %136 = sbr.rel (%p134) target = $region20
      $region19: #{tpu_custom_call.1} parent=5 // pred_region
        // Predicated region
        $region21: #{tpu_custom_call.1} parent=19 // pred_check
          %p137 = pneg %p36
        $region22: #{tpu_custom_call.1} parent=19 // pred_check_branch
          %139 = sbr.rel (%p137) target = $region24
        $region23: #{tpu_custom_call.1} parent=19 // pred_region
          %p140 = scmp.lt.s32.totalorder %s16, 1
          %s141 = scalar_select %p140, %s16, 1
          %s142 = smul.addr %s141, 32
          %s143 = smul.addr %s142, 8
          %s144 = scalar_lea.vmem %s0, %s143
        $region24: #{tpu_custom_call.1} parent=19 // pred_fallthru
          _
      $region20: #{tpu_custom_call.1} parent=5 // pred_fallthru
        _
      %p145 = scmp.le.s32.totalorder 1, %s16
      %p146 = scmp.lt.s32.totalorder %s16, 3
      %p147 = pnand %p145, %p146
      %p148 = pneg %p147
      // Predicated region
      $region25: #{tpu_custom_call.1} parent=5 // pred_check
        _
      $region26: #{tpu_custom_call.1} parent=5 // pred_check_branch
        %150 = sbr.rel (%p147) target = $region28
      $region27: #{tpu_custom_call.1} parent=5 // pred_region
        %s151 = ssub.s32 %s16, 1
        %p152 = scmp.lt.s32.totalorder %s21, 1
        %s153 = scalar_select %p152, %s21, 1
        %s154 = smul.addr %s153, 32
        %s155 = smul.addr %s154, 8
        %s156 = scalar_lea.vmem %s0, %s155
        %p157 = pneg %p42
        %p158 = pneg %p39
        %p159 = pneg %p63
        %p160 = pneg %p60
        %p161 = pneg %p89
        %p162 = pneg %p86
        %s163 = sand.u32 %s76, 1
        %s164 = scalar_lea.sflag [#allocation6], %s163
        %s165 = sand.u32 %s76, 1
        %s166 = smul.addr %s165, 64
        %s167 = scalar_lea.vmem [#allocation5], %s166
        %p168 = pneg %p115
        %p169 = pneg %p112
        %s170 = sand.u32 %s102, 1
        %s171 = scalar_lea.sflag [#allocation8], %s170
        %s172 = sand.u32 %s102, 1
        %s173 = smul.addr %s172, 2
        %s174 = scalar_lea.vmem [#allocation7], %s173
        %p175 = scmp.lt.s32.totalorder %s21, 1
        %s176 = scalar_select %p175, %s21, 1
        %s177 = smul.addr %s176, 32
        %s178 = smul.addr %s177, 8
        %s179 = scalar_lea.vmem %s0, %s178
        %v180 = vld [vmem:[%s179] sm:$0xff]
        %v181 = vld [vmem:[%s179 + $0x8] sm:$0xff]
        %v182 = vld [vmem:[%s179 + $0x20] sm:$0xff]
        %v183 = vld [vmem:[%s179 + $0x28] sm:$0xff]
        %v184 = vld [vmem:[%s179 + $0x40] sm:$0xff]
        %v185 = vld [vmem:[%s179 + $0x48] sm:$0xff]
        %v186 = vld [vmem:[%s179 + $0x60] sm:$0xff]
        %v187 = vld [vmem:[%s179 + $0x68] sm:$0xff]
        %v188 = vld [vmem:[%s179 + $0x80] sm:$0xff]
        %v189 = vld [vmem:[%s179 + $0x88] sm:$0xff]
        %v190 = vld [vmem:[%s179 + $0xa0] sm:$0xff]
        %v191 = vld [vmem:[%s179 + $0xa8] sm:$0xff]
        %v192 = vld [vmem:[%s179 + $0xc0] sm:$0xff]
        %v193 = vld [vmem:[%s179 + $0xc8] sm:$0xff]
        %v194 = vld [vmem:[%s179 + $0xe0] sm:$0xff]
        %v195 = vld [vmem:[%s179 + $0xe8] sm:$0xff]
        %s196 = scalar_lea.vmem %s179, 16
        %v197 = vld [vmem:[%s196] sm:$0xff]
        %v198 = vld [vmem:[%s196 + $0x8] sm:$0xff]
        %v199 = vld [vmem:[%s196 + $0x20] sm:$0xff]
        %v200 = vld [vmem:[%s196 + $0x28] sm:$0xff]
        %v201 = vld [vmem:[%s196 + $0x40] sm:$0xff]
        %v202 = vld [vmem:[%s196 + $0x48] sm:$0xff]
        %v203 = vld [vmem:[%s196 + $0x60] sm:$0xff]
        %v204 = vld [vmem:[%s196 + $0x68] sm:$0xff]
        %v205 = vld [vmem:[%s196 + $0x80] sm:$0xff]
        %v206 = vld [vmem:[%s196 + $0x88] sm:$0xff]
        %v207 = vld [vmem:[%s196 + $0xa0] sm:$0xff]
        %v208 = vld [vmem:[%s196 + $0xa8] sm:$0xff]
        %v209 = vld [vmem:[%s196 + $0xc0] sm:$0xff]
        %v210 = vld [vmem:[%s196 + $0xc8] sm:$0xff]
        %v211 = vld [vmem:[%s196 + $0xe0] sm:$0xff]
        %v212 = vld [vmem:[%s196 + $0xe8] sm:$0xff]
        %v213 = vmax.f32 %v180, %v197
        %v214 = vmax.f32 %v181, %v198
        %v215 = vmax.f32 %v182, %v199
        %v216 = vmax.f32 %v183, %v200
        %v217 = vmax.f32 %v184, %v201
        %v218 = vmax.f32 %v185, %v202
        %v219 = vmax.f32 %v186, %v203
        %v220 = vmax.f32 %v187, %v204
        %v221 = vmax.f32 %v188, %v205
        %v222 = vmax.f32 %v189, %v206
        %v223 = vmax.f32 %v190, %v207
        %v224 = vmax.f32 %v191, %v208
        %v225 = vmax.f32 %v192, %v209
        %v226 = vmax.f32 %v193, %v210
        %v227 = vmax.f32 %v194, %v211
        %v228 = vmax.f32 %v195, %v212
        %vm229 = vcmask 31744
        %230 = vst.msk [vmem:[#allocation2] sm:$0xff] %vm229, %v213
        %231 = vst.msk [vmem:[#allocation2 + $0x8] sm:$0xff] %vm229, %v214
        %232 = vst.msk [vmem:[#allocation2 + $0x10] sm:$0xff] %vm229, %v215
        %233 = vst.msk [vmem:[#allocation2 + $0x18] sm:$0xff] %vm229, %v216
        %234 = vst.msk [vmem:[#allocation2 + $0x20] sm:$0xff] %vm229, %v217
        %235 = vst.msk [vmem:[#allocation2 + $0x28] sm:$0xff] %vm229, %v218
        %236 = vst.msk [vmem:[#allocation2 + $0x30] sm:$0xff] %vm229, %v219
        %237 = vst.msk [vmem:[#allocation2 + $0x38] sm:$0xff] %vm229, %v220
        %238 = vst.msk [vmem:[#allocation2 + $0x40] sm:$0xff] %vm229, %v221
        %239 = vst.msk [vmem:[#allocation2 + $0x48] sm:$0xff] %vm229, %v222
        %240 = vst.msk [vmem:[#allocation2 + $0x50] sm:$0xff] %vm229, %v223
        %241 = vst.msk [vmem:[#allocation2 + $0x58] sm:$0xff] %vm229, %v224
        %242 = vst.msk [vmem:[#allocation2 + $0x60] sm:$0xff] %vm229, %v225
        %243 = vst.msk [vmem:[#allocation2 + $0x68] sm:$0xff] %vm229, %v226
        %244 = vst.msk [vmem:[#allocation2 + $0x70] sm:$0xff] %vm229, %v227
        %245 = vst.msk [vmem:[#allocation2 + $0x78] sm:$0xff] %vm229, %v228
        %v246 = vld [vmem:[#allocation2] ss:$2 sm:$0xff]
        %s247 = scalar_lea.vmem [#allocation2], 16
        %v248 = vld [vmem:[%s247] ss:$2 sm:$0xff]
        %s249 = scalar_lea.vmem [#allocation2], 32
        %v250 = vld [vmem:[%s249] ss:$2 sm:$0xff]
        %s251 = scalar_lea.vmem [#allocation2], 48
        %v252 = vld [vmem:[%s251] ss:$2 sm:$0xff]
        %s253 = scalar_lea.vmem [#allocation2], 64
        %v254 = vld [vmem:[%s253] ss:$2 sm:$0xff]
        %s255 = scalar_lea.vmem [#allocation2], 80
        %v256 = vld [vmem:[%s255] ss:$2 sm:$0xff]
        %s257 = scalar_lea.vmem [#allocation2], 96
        %v258 = vld [vmem:[%s257] ss:$2 sm:$0xff]
        %s259 = scalar_lea.vmem [#allocation2], 112
        %v260 = vld [vmem:[%s259] ss:$2 sm:$0xff]
        %s261 = scalar_lea.vmem [#allocation2], 1
        %v262 = vld [vmem:[%s261] ss:$2 sm:$0xff]
        %s263 = scalar_lea.vmem [#allocation2], 17
        %v264 = vld [vmem:[%s263] ss:$2 sm:$0xff]
        %s265 = scalar_lea.vmem [#allocation2], 33
        %v266 = vld [vmem:[%s265] ss:$2 sm:$0xff]
        %s267 = scalar_lea.vmem [#allocation2], 49
        %v268 = vld [vmem:[%s267] ss:$2 sm:$0xff]
        %s269 = scalar_lea.vmem [#allocation2], 65
        %v270 = vld [vmem:[%s269] ss:$2 sm:$0xff]
        %s271 = scalar_lea.vmem [#allocation2], 81
        %v272 = vld [vmem:[%s271] ss:$2 sm:$0xff]
        %s273 = scalar_lea.vmem [#allocation2], 97
        %v274 = vld [vmem:[%s273] ss:$2 sm:$0xff]
        %s275 = scalar_lea.vmem [#allocation2], 113
        %v276 = vld [vmem:[%s275] ss:$2 sm:$0xff]
        %v277 = vmax.f32 %v246, %v262
        %v278 = vmax.f32 %v248, %v264
        %v279 = vmax.f32 %v250, %v266
        %v280 = vmax.f32 %v252, %v268
        %v281 = vmax.f32 %v254, %v270
        %v282 = vmax.f32 %v256, %v272
        %v283 = vmax.f32 %v258, %v274
        %v284 = vmax.f32 %v260, %v276
        %vm285 = vcmask 97280
        %286 = vst.msk [vmem:[#allocation3] sm:$0xff] %vm285, 0.0
        %s287 = scalar_lea.vmem [#allocation3], 72
        %288 = vst.msk [vmem:[%s287] sm:$0xff] %vm285, 0.0
        %297 = vrot.lane.b32.xlu0 %v277, 4
        %v298 = vpop.permute.xlu0 %297
        %299 = vrot.lane.b32.xlu0 %v278, 4
        %v300 = vpop.permute.xlu0 %299
        %301 = vrot.lane.b32.xlu0 %v279, 4
        %v302 = vpop.permute.xlu0 %301
        %303 = vrot.lane.b32.xlu0 %v280, 4
        %v304 = vpop.permute.xlu0 %303
        %305 = vrot.lane.b32.xlu0 %v281, 4
        %v306 = vpop.permute.xlu0 %305
        %307 = vrot.lane.b32.xlu0 %v282, 4
        %v308 = vpop.permute.xlu0 %307
        %309 = vrot.lane.b32.xlu0 %v283, 4
        %v310 = vpop.permute.xlu0 %309
        %311 = vrot.lane.b32.xlu0 %v284, 4
        %v312 = vpop.permute.xlu0 %311
        %s321 = scalar_lea.vmem [#allocation3], 8
        %vm322 = vcmask 64544
        %323 = vst.msk [vmem:[%s321] sm:$0xff] %vm322, %v298
        %324 = vst.msk [vmem:[%s321 + $0x8] sm:$0xff] %vm322, %v300
        %325 = vst.msk [vmem:[%s321 + $0x10] sm:$0xff] %vm322, %v302
        %326 = vst.msk [vmem:[%s321 + $0x18] sm:$0xff] %vm322, %v304
        %327 = vst.msk [vmem:[%s321 + $0x20] sm:$0xff] %vm322, %v306
        %328 = vst.msk [vmem:[%s321 + $0x28] sm:$0xff] %vm322, %v308
        %329 = vst.msk [vmem:[%s321 + $0x30] sm:$0xff] %vm322, %v310
        %330 = vst.msk [vmem:[%s321 + $0x38] sm:$0xff] %vm322, %v312
        %vm331 = vcmask 30720
        %332 = vst.msk [vmem:[%s321 + $0x1] sm:$0x7f] %vm331, %v277
        %333 = vst.msk [vmem:[%s321 + $0x9] sm:$0x7f] %vm331, %v278
        %334 = vst.msk [vmem:[%s321 + $0x11] sm:$0x7f] %vm331, %v279
        %335 = vst.msk [vmem:[%s321 + $0x19] sm:$0x7f] %vm331, %v280
        %336 = vst.msk [vmem:[%s321 + $0x21] sm:$0x7f] %vm331, %v281
        %337 = vst.msk [vmem:[%s321 + $0x29] sm:$0x7f] %vm331, %v282
        %338 = vst.msk [vmem:[%s321 + $0x31] sm:$0x7f] %vm331, %v283
        %339 = vst.msk [vmem:[%s321 + $0x39] sm:$0x7f] %vm331, %v284
        %vm340 = vcmask 24576
        %341 = vst.msk [vmem:[%s321] sm:$0x1] %vm340, 0.0
        %342 = vst.msk [vmem:[%s321 + $0x8] sm:$0x1] %vm340, 0.0
        %343 = vst.msk [vmem:[%s321 + $0x10] sm:$0x1] %vm340, 0.0
        %344 = vst.msk [vmem:[%s321 + $0x18] sm:$0x1] %vm340, 0.0
        %345 = vst.msk [vmem:[%s321 + $0x20] sm:$0x1] %vm340, 0.0
        %346 = vst.msk [vmem:[%s321 + $0x28] sm:$0x1] %vm340, 0.0
        %347 = vst.msk [vmem:[%s321 + $0x30] sm:$0x1] %vm340, 0.0
        %348 = vst.msk [vmem:[%s321 + $0x38] sm:$0x1] %vm340, 0.0
        %349 = vrot.lane.b32.xlu0 %v277, 8
        %v350 = vpop.permute.xlu0 %349
        %351 = vrot.lane.b32.xlu0 %v278, 8
        %v352 = vpop.permute.xlu0 %351
        %353 = vrot.lane.b32.xlu0 %v279, 8
        %v354 = vpop.permute.xlu0 %353
        %355 = vrot.lane.b32.xlu0 %v280, 8
        %v356 = vpop.permute.xlu0 %355
        %357 = vrot.lane.b32.xlu0 %v281, 8
        %v358 = vpop.permute.xlu0 %357
        %359 = vrot.lane.b32.xlu0 %v282, 8
        %v360 = vpop.permute.xlu0 %359
        %361 = vrot.lane.b32.xlu0 %v283, 8
        %v362 = vpop.permute.xlu0 %361
        %363 = vrot.lane.b32.xlu0 %v284, 8
        %v364 = vpop.permute.xlu0 %363
        %vm373 = vcmask 97345
        %374 = vst.msk [vmem:[%s321 - $0x1] sm:$0xfe] %vm373, %v350
        %375 = vst.msk [vmem:[%s321 + $0x7] sm:$0xfe] %vm373, %v352
        %376 = vst.msk [vmem:[%s321 + $0xf] sm:$0xfe] %vm373, %v354
        %377 = vst.msk [vmem:[%s321 + $0x17] sm:$0xfe] %vm373, %v356
        %378 = vst.msk [vmem:[%s321 + $0x1f] sm:$0xfe] %vm373, %v358
        %379 = vst.msk [vmem:[%s321 + $0x27] sm:$0xfe] %vm373, %v360
        %380 = vst.msk [vmem:[%s321 + $0x2f] sm:$0xfe] %vm373, %v362
        %381 = vst.msk [vmem:[%s321 + $0x37] sm:$0xfe] %vm373, %v364
        %vm382 = vcmask 90176
        %383 = vst.msk [vmem:[%s321 + $0x7] sm:$0x1] %vm382, 0.0
        %384 = vst.msk [vmem:[%s321 + $0xf] sm:$0x1] %vm382, 0.0
        %385 = vst.msk [vmem:[%s321 + $0x17] sm:$0x1] %vm382, 0.0
        %386 = vst.msk [vmem:[%s321 + $0x1f] sm:$0x1] %vm382, 0.0
        %387 = vst.msk [vmem:[%s321 + $0x27] sm:$0x1] %vm382, 0.0
        %388 = vst.msk [vmem:[%s321 + $0x2f] sm:$0x1] %vm382, 0.0
        %389 = vst.msk [vmem:[%s321 + $0x37] sm:$0x1] %vm382, 0.0
        %390 = vst.msk [vmem:[%s321 + $0x3f] sm:$0x1] %vm382, 0.0
        %v391 = vld [vmem:[#allocation3] sm:$0xff]
        %v392 = vld [vmem:[#allocation3 + $0x8] sm:$0xff]
        %v393 = vld [vmem:[#allocation3 + $0x10] sm:$0xff]
        %v394 = vld [vmem:[#allocation3 + $0x18] sm:$0xff]
        %v395 = vld [vmem:[#allocation3 + $0x20] sm:$0xff]
        %v396 = vld [vmem:[#allocation3 + $0x28] sm:$0xff]
        %v397 = vld [vmem:[#allocation3 + $0x30] sm:$0xff]
        %v398 = vld [vmem:[#allocation3 + $0x38] sm:$0xff]
        %v399 = vld [vmem:[%s1] sm:$0xff]
        %v400 = vld [vmem:[%s1 + $0x8] sm:$0xf]
        %v402 = vsel %vm285, %v391, 0
        %v405 = vsel %vm285, %v392, 0
        %v408 = vsel %vm285, %v393, 0
        %v411 = vsel %vm285, %v394, 0
        %v414 = vsel %vm285, %v395, 0
        %v417 = vsel %vm285, %v396, 0
        %v420 = vsel %vm285, %v397, 0
        %v423 = vsel %vm285, %v398, 0
        %vm425 = vcmask 1043456
        %v427 = vsel %vm425, %v400, 0
        %429 = vmatprep.subr.mxu0 0.0
        %430 = vmatpush1.msra.mxu0 %v399
        %431 = vmatprep.subr.mxu0 0.0
        %432 = vmatpush1.msra.mxu0 %v427
        %433 = vmatprep.subr.mxu0 0.0
        %434 = vmatpush1.msra.mxu0 0.0
        %435 = vmatprep.subr.mxu0 0.0
        %436 = vmatpush1.msra.mxu0 0.0
        %437 = vmatprep.subr.mxu0 0.0
        %438 = vmatpush1.msra.mxu0 0.0
        %439 = vmatprep.subr.mxu0 0.0
        %440 = vmatpush1.msra.mxu0 0.0
        %441 = vmatprep.subr.mxu0 0.0
        %442 = vmatpush1.msra.mxu0 0.0
        %443 = vmatprep.subr.mxu0 0.0
        %444 = vmatpush1.msra.mxu0 0.0
        %445 = vmatprep.subr.mxu0 0.0
        %446 = vmatpush1.msra.mxu0 0.0
        %447 = vmatprep.subr.mxu0 0.0
        %448 = vmatpush1.msra.mxu0 0.0
        %449 = vmatprep.subr.mxu0 0.0
        %450 = vmatpush1.msra.mxu0 0.0
        %451 = vmatprep.subr.mxu0 0.0
        %452 = vmatpush1.msra.mxu0 0.0
        %453 = vmatprep.subr.mxu0 0.0
        %454 = vmatpush1.msra.mxu0 0.0
        %455 = vmatprep.subr.mxu0 0.0
        %456 = vmatpush1.msra.mxu0 0.0
        %457 = vmatprep.subr.mxu0 0.0
        %458 = vmatpush1.msra.mxu0 0.0
        %459 = vmatprep.subr.mxu0 0.0
        %460 = vmatpush1.msra.mxu0 0.0
        %461 = vmatprep.subr.mxu0 0.0
        %462 = vmatpush1.msra.mxu0 0.0
        %463 = vmatprep.subr.mxu0 0.0
        %464 = vmatpush1.msra.mxu0 0.0
        %465 = vmatprep.subr.mxu0 0.0
        %466 = vmatpush1.msra.mxu0 0.0
        %467 = vmatprep.subr.mxu0 0.0
        %468 = vmatpush1.msra.mxu0 0.0
        %469 = vmatprep.subr.mxu0 0.0
        %470 = vmatpush1.msra.mxu0 0.0
        %471 = vmatprep.subr.mxu0 0.0
        %472 = vmatpush1.msra.mxu0 0.0
        %473 = vmatprep.subr.mxu0 0.0
        %474 = vmatpush1.msra.mxu0 0.0
        %475 = vmatprep.subr.mxu0 0.0
        %476 = vmatpush1.msra.mxu0 0.0
        %477 = vmatprep.subr.mxu0 0.0
        %478 = vmatpush1.msra.mxu0 0.0
        %479 = vmatprep.subr.mxu0 0.0
        %480 = vmatpush1.msra.mxu0 0.0
        %481 = vmatprep.subr.mxu0 0.0
        %482 = vmatpush1.msra.mxu0 0.0
        %483 = vmatprep.subr.mxu0 0.0
        %484 = vmatpush1.msra.mxu0 0.0
        %485 = vmatprep.subr.mxu0 0.0
        %486 = vmatpush1.msra.mxu0 0.0
        %487 = vmatprep.subr.mxu0 0.0
        %488 = vmatpush1.msra.mxu0 0.0
        %489 = vmatprep.subr.mxu0 0.0
        %490 = vmatpush1.msra.mxu0 0.0
        %491 = vmatprep.subr.mxu0 0.0
        %492 = vmatpush1.msra.mxu0 0.0
        %493 = vmatprep.mubr.f32.mxu0 0.0
        %494 = vmatmul.mubr.f32.gmra.mrb[0].mxu0 %v402
        %v495 = vpop.f32.mrb[0].mxu0
        %v496 = vadd.f32 0.0, %v495
        %v497 = vpop.f32.mrb[0].mxu0
        %498 = vmatprep.mubr.f32.mxu0 0.0
        %499 = vmatmul.mubr.f32.gmra.mrb[0].mxu0 %v405
        %v500 = vpop.f32.mrb[0].mxu0
        %v501 = vadd.f32 0.0, %v500
        %v502 = vpop.f32.mrb[0].mxu0
        %503 = vmatprep.mubr.f32.mxu0 0.0
        %504 = vmatmul.mubr.f32.gmra.mrb[0].mxu0 %v408
        %v505 = vpop.f32.mrb[0].mxu0
        %v506 = vadd.f32 0.0, %v505
        %v507 = vpop.f32.mrb[0].mxu0
        %508 = vmatprep.mubr.f32.mxu0 0.0
        %509 = vmatmul.mubr.f32.gmra.mrb[0].mxu0 %v411
        %v510 = vpop.f32.mrb[0].mxu0
        %v511 = vadd.f32 0.0, %v510
        %v512 = vpop.f32.mrb[0].mxu0
        %513 = vmatprep.mubr.f32.mxu0 0.0
        %514 = vmatmul.mubr.f32.gmra.mrb[0].mxu0 %v414
        %v515 = vpop.f32.mrb[0].mxu0
        %v516 = vadd.f32 0.0, %v515
        %v517 = vpop.f32.mrb[0].mxu0
        %518 = vmatprep.mubr.f32.mxu0 0.0
        %519 = vmatmul.mubr.f32.gmra.mrb[0].mxu0 %v417
        %v520 = vpop.f32.mrb[0].mxu0
        %v521 = vadd.f32 0.0, %v520
        %v522 = vpop.f32.mrb[0].mxu0
        %523 = vmatprep.mubr.f32.mxu0 0.0
        %524 = vmatmul.mubr.f32.gmra.mrb[0].mxu0 %v420
        %v525 = vpop.f32.mrb[0].mxu0
        %v526 = vadd.f32 0.0, %v525
        %v527 = vpop.f32.mrb[0].mxu0
        %528 = vmatprep.mubr.f32.mxu0 0.0
        %529 = vmatmul.mubr.f32.gmra.mrb[0].mxu0 %v423
        %v530 = vpop.f32.mrb[0].mxu0
        %v531 = vadd.f32 0.0, %v530
        %v532 = vpop.f32.mrb[0].mxu0
        %533 = vdwg.mxu0
        %vm534 = vcmask 64512
        %535 = vst.msk [vmem:[#allocation4] sm:$0xff] %vm534, %v496
        %536 = vst.msk [vmem:[#allocation4 + $0x8] sm:$0xff] %vm534, %v501
        %537 = vst.msk [vmem:[#allocation4 + $0x10] sm:$0xff] %vm534, %v506
        %538 = vst.msk [vmem:[#allocation4 + $0x18] sm:$0xff] %vm534, %v511
        %539 = vst.msk [vmem:[#allocation4 + $0x20] sm:$0xff] %vm534, %v516
        %540 = vst.msk [vmem:[#allocation4 + $0x28] sm:$0xff] %vm534, %v521
        %541 = vst.msk [vmem:[#allocation4 + $0x30] sm:$0xff] %vm534, %v526
        %542 = vst.msk [vmem:[#allocation4 + $0x38] sm:$0xff] %vm534, %v531
        %v543 = vld [vmem:[%s321] sm:$0xff]
        %v544 = vld [vmem:[%s321 + $0x8] sm:$0xff]
        %v545 = vld [vmem:[%s321 + $0x10] sm:$0xff]
        %v546 = vld [vmem:[%s321 + $0x18] sm:$0xff]
        %v547 = vld [vmem:[%s321 + $0x20] sm:$0xff]
        %v548 = vld [vmem:[%s321 + $0x28] sm:$0xff]
        %v549 = vld [vmem:[%s321 + $0x30] sm:$0xff]
        %v550 = vld [vmem:[%s321 + $0x38] sm:$0xff]
        %v551 = vld [vmem:[%s1 + $0xc] sm:$0xff]
        %v552 = vld [vmem:[%s1 + $0x14] sm:$0xf]
        %v554 = vsel %vm285, %v543, 0
        %v557 = vsel %vm285, %v544, 0
        %v560 = vsel %vm285, %v545, 0
        %v563 = vsel %vm285, %v546, 0
        %v566 = vsel %vm285, %v547, 0
        %v569 = vsel %vm285, %v548, 0
        %v572 = vsel %vm285, %v549, 0
        %v575 = vsel %vm285, %v550, 0
        %v578 = vsel %vm425, %v552, 0
        %580 = vmatprep.subr.mxu0 0.0
        %581 = vmatpush1.msra.mxu0 %v551
        %582 = vmatprep.subr.mxu0 0.0
        %583 = vmatpush1.msra.mxu0 %v578
        %584 = vmatprep.subr.mxu0 0.0
        %585 = vmatpush1.msra.mxu0 0.0
        %586 = vmatprep.subr.mxu0 0.0
        %587 = vmatpush1.msra.mxu0 0.0
        %588 = vmatprep.subr.mxu0 0.0
        %589 = vmatpush1.msra.mxu0 0.0
        %590 = vmatprep.subr.mxu0 0.0
        %591 = vmatpush1.msra.mxu0 0.0
        %592 = vmatprep.subr.mxu0 0.0
        %593 = vmatpush1.msra.mxu0 0.0
        %594 = vmatprep.subr.mxu0 0.0
        %595 = vmatpush1.msra.mxu0 0.0
        %596 = vmatprep.subr.mxu0 0.0
        %597 = vmatpush1.msra.mxu0 0.0
        %598 = vmatprep.subr.mxu0 0.0
        %599 = vmatpush1.msra.mxu0 0.0
        %600 = vmatprep.subr.mxu0 0.0
        %601 = vmatpush1.msra.mxu0 0.0
        %602 = vmatprep.subr.mxu0 0.0
        %603 = vmatpush1.msra.mxu0 0.0
        %604 = vmatprep.subr.mxu0 0.0
        %605 = vmatpush1.msra.mxu0 0.0
        %606 = vmatprep.subr.mxu0 0.0
        %607 = vmatpush1.msra.mxu0 0.0
        %608 = vmatprep.subr.mxu0 0.0
        %609 = vmatpush1.msra.mxu0 0.0
        %610 = vmatprep.subr.mxu0 0.0
        %611 = vmatpush1.msra.mxu0 0.0
        %612 = vmatprep.subr.mxu0 0.0
        %613 = vmatpush1.msra.mxu0 0.0
        %614 = vmatprep.subr.mxu0 0.0
        %615 = vmatpush1.msra.mxu0 0.0
        %616 = vmatprep.subr.mxu0 0.0
        %617 = vmatpush1.msra.mxu0 0.0
        %618 = vmatprep.subr.mxu0 0.0
        %619 = vmatpush1.msra.mxu0 0.0
        %620 = vmatprep.subr.mxu0 0.0
        %621 = vmatpush1.msra.mxu0 0.0
        %622 = vmatprep.subr.mxu0 0.0
        %623 = vmatpush1.msra.mxu0 0.0
        %624 = vmatprep.subr.mxu0 0.0
        %625 = vmatpush1.msra.mxu0 0.0
        %626 = vmatprep.subr.mxu0 0.0
        %627 = vmatpush1.msra.mxu0 0.0
        %628 = vmatprep.subr.mxu0 0.0
        %629 = vmatpush1.msra.mxu0 0.0
        %630 = vmatprep.subr.mxu0 0.0
        %631 = vmatpush1.msra.mxu0 0.0
        %632 = vmatprep.subr.mxu0 0.0
        %633 = vmatpush1.msra.mxu0 0.0
        %634 = vmatprep.subr.mxu0 0.0
        %635 = vmatpush1.msra.mxu0 0.0
        %636 = vmatprep.subr.mxu0 0.0
        %637 = vmatpush1.msra.mxu0 0.0
        %638 = vmatprep.subr.mxu0 0.0
        %639 = vmatpush1.msra.mxu0 0.0
        %640 = vmatprep.subr.mxu0 0.0
        %641 = vmatpush1.msra.mxu0 0.0
        %642 = vmatprep.subr.mxu0 0.0
        %643 = vmatpush1.msra.mxu0 0.0
        %644 = vmatprep.mubr.f32.mxu0 0.0
        %645 = vmatmul.mubr.f32.gmra.mrb[0].mxu0 %v554
        %v646 = vpop.f32.mrb[0].mxu0
        %v647 = vadd.f32 0.0, %v646
        %v648 = vpop.f32.mrb[0].mxu0
        %649 = vmatprep.mubr.f32.mxu0 0.0
        %650 = vmatmul.mubr.f32.gmra.mrb[0].mxu0 %v557
        %v651 = vpop.f32.mrb[0].mxu0
        %v652 = vadd.f32 0.0, %v651
        %v653 = vpop.f32.mrb[0].mxu0
        %654 = vmatprep.mubr.f32.mxu0 0.0
        %655 = vmatmul.mubr.f32.gmra.mrb[0].mxu0 %v560
        %v656 = vpop.f32.mrb[0].mxu0
        %v657 = vadd.f32 0.0, %v656
        %v658 = vpop.f32.mrb[0].mxu0
        %659 = vmatprep.mubr.f32.mxu0 0.0
        %660 = vmatmul.mubr.f32.gmra.mrb[0].mxu0 %v563
        %v661 = vpop.f32.mrb[0].mxu0
        %v662 = vadd.f32 0.0, %v661
        %v663 = vpop.f32.mrb[0].mxu0
        %664 = vmatprep.mubr.f32.mxu0 0.0
        %665 = vmatmul.mubr.f32.gmra.mrb[0].mxu0 %v566
        %v666 = vpop.f32.mrb[0].mxu0
        %v667 = vadd.f32 0.0, %v666
        %v668 = vpop.f32.mrb[0].mxu0
        %669 = vmatprep.mubr.f32.mxu0 0.0
        %670 = vmatmul.mubr.f32.gmra.mrb[0].mxu0 %v569
        %v671 = vpop.f32.mrb[0].mxu0
        %v672 = vadd.f32 0.0, %v671
        %v673 = vpop.f32.mrb[0].mxu0
        %674 = vmatprep.mubr.f32.mxu0 0.0
        %675 = vmatmul.mubr.f32.gmra.mrb[0].mxu0 %v572
        %v676 = vpop.f32.mrb[0].mxu0
        %v677 = vadd.f32 0.0, %v676
        %v678 = vpop.f32.mrb[0].mxu0
        %679 = vmatprep.mubr.f32.mxu0 0.0
        %680 = vmatmul.mubr.f32.gmra.mrb[0].mxu0 %v575
        %v681 = vpop.f32.mrb[0].mxu0
        %v682 = vadd.f32 0.0, %v681
        %v683 = vpop.f32.mrb[0].mxu0
        %684 = vdwg.mxu0
        %v685 = vld [vmem:[#allocation4] sm:$0xff]
        %v686 = vld [vmem:[#allocation4 + $0x8] sm:$0xff]
        %v687 = vld [vmem:[#allocation4 + $0x10] sm:$0xff]
        %v688 = vld [vmem:[#allocation4 + $0x18] sm:$0xff]
        %v689 = vld [vmem:[#allocation4 + $0x20] sm:$0xff]
        %v690 = vld [vmem:[#allocation4 + $0x28] sm:$0xff]
        %v691 = vld [vmem:[#allocation4 + $0x30] sm:$0xff]
        %v692 = vld [vmem:[#allocation4 + $0x38] sm:$0xff]
        %v693 = vadd.f32 %v685, %v647
        %v694 = vadd.f32 %v686, %v652
        %v695 = vadd.f32 %v687, %v657
        %v696 = vadd.f32 %v688, %v662
        %v697 = vadd.f32 %v689, %v667
        %v698 = vadd.f32 %v690, %v672
        %v699 = vadd.f32 %v691, %v677
        %v700 = vadd.f32 %v692, %v682
        %701 = vst.msk [vmem:[#allocation4] sm:$0xff] %vm534, %v693
        %702 = vst.msk [vmem:[#allocation4 + $0x8] sm:$0xff] %vm534, %v694
        %703 = vst.msk [vmem:[#allocation4 + $0x10] sm:$0xff] %vm534, %v695
        %704 = vst.msk [vmem:[#allocation4 + $0x18] sm:$0xff] %vm534, %v696
        %705 = vst.msk [vmem:[#allocation4 + $0x20] sm:$0xff] %vm534, %v697
        %706 = vst.msk [vmem:[#allocation4 + $0x28] sm:$0xff] %vm534, %v698
        %707 = vst.msk [vmem:[#allocation4 + $0x30] sm:$0xff] %vm534, %v699
        %708 = vst.msk [vmem:[#allocation4 + $0x38] sm:$0xff] %vm534, %v700
        %s709 = scalar_lea.vmem [#allocation3], 16
        %v710 = vld [vmem:[%s709] sm:$0xff]
        %v711 = vld [vmem:[%s709 + $0x8] sm:$0xff]
        %v712 = vld [vmem:[%s709 + $0x10] sm:$0xff]
        %v713 = vld [vmem:[%s709 + $0x18] sm:$0xff]
        %v714 = vld [vmem:[%s709 + $0x20] sm:$0xff]
        %v715 = vld [vmem:[%s709 + $0x28] sm:$0xff]
        %v716 = vld [vmem:[%s709 + $0x30] sm:$0xff]
        %v717 = vld [vmem:[%s709 + $0x38] sm:$0xff]
        %v718 = vld [vmem:[%s1 + $0x18] sm:$0xff]
        %v719 = vld [vmem:[%s1 + $0x20] sm:$0xf]
        %v721 = vsel %vm285, %v710, 0
        %v724 = vsel %vm285, %v711, 0
        %v727 = vsel %vm285, %v712, 0
        %v730 = vsel %vm285, %v713, 0
        %v733 = vsel %vm285, %v714, 0
        %v736 = vsel %vm285, %v715, 0
        %v739 = vsel %vm285, %v716, 0
        %v742 = vsel %vm285, %v717, 0
        %v745 = vsel %vm425, %v719, 0
        %747 = vmatprep.subr.mxu0 0.0
        %748 = vmatpush1.msra.mxu0 %v718
        %749 = vmatprep.subr.mxu0 0.0
        %750 = vmatpush1.msra.mxu0 %v745
        %751 = vmatprep.subr.mxu0 0.0
        %752 = vmatpush1.msra.mxu0 0.0
        %753 = vmatprep.subr.mxu0 0.0
        %754 = vmatpush1.msra.mxu0 0.0
        %755 = vmatprep.subr.mxu0 0.0
        %756 = vmatpush1.msra.mxu0 0.0
        %757 = vmatprep.subr.mxu0 0.0
        %758 = vmatpush1.msra.mxu0 0.0
        %759 = vmatprep.subr.mxu0 0.0
        %760 = vmatpush1.msra.mxu0 0.0
        %761 = vmatprep.subr.mxu0 0.0
        %762 = vmatpush1.msra.mxu0 0.0
        %763 = vmatprep.subr.mxu0 0.0
        %764 = vmatpush1.msra.mxu0 0.0
        %765 = vmatprep.subr.mxu0 0.0
        %766 = vmatpush1.msra.mxu0 0.0
        %767 = vmatprep.subr.mxu0 0.0
        %768 = vmatpush1.msra.mxu0 0.0
        %769 = vmatprep.subr.mxu0 0.0
        %770 = vmatpush1.msra.mxu0 0.0
        %771 = vmatprep.subr.mxu0 0.0
        %772 = vmatpush1.msra.mxu0 0.0
        %773 = vmatprep.subr.mxu0 0.0
        %774 = vmatpush1.msra.mxu0 0.0
        %775 = vmatprep.subr.mxu0 0.0
        %776 = vmatpush1.msra.mxu0 0.0
        %777 = vmatprep.subr.mxu0 0.0
        %778 = vmatpush1.msra.mxu0 0.0
        %779 = vmatprep.subr.mxu0 0.0
        %780 = vmatpush1.msra.mxu0 0.0
        %781 = vmatprep.subr.mxu0 0.0
        %782 = vmatpush1.msra.mxu0 0.0
        %783 = vmatprep.subr.mxu0 0.0
        %784 = vmatpush1.msra.mxu0 0.0
        %785 = vmatprep.subr.mxu0 0.0
        %786 = vmatpush1.msra.mxu0 0.0
        %787 = vmatprep.subr.mxu0 0.0
        %788 = vmatpush1.msra.mxu0 0.0
        %789 = vmatprep.subr.mxu0 0.0
        %790 = vmatpush1.msra.mxu0 0.0
        %791 = vmatprep.subr.mxu0 0.0
        %792 = vmatpush1.msra.mxu0 0.0
        %793 = vmatprep.subr.mxu0 0.0
        %794 = vmatpush1.msra.mxu0 0.0
        %795 = vmatprep.subr.mxu0 0.0
        %796 = vmatpush1.msra.mxu0 0.0
        %797 = vmatprep.subr.mxu0 0.0
        %798 = vmatpush1.msra.mxu0 0.0
        %799 = vmatprep.subr.mxu0 0.0
        %800 = vmatpush1.msra.mxu0 0.0
        %801 = vmatprep.subr.mxu0 0.0
        %802 = vmatpush1.msra.mxu0 0.0
        %803 = vmatprep.subr.mxu0 0.0
        %804 = vmatpush1.msra.mxu0 0.0
        %805 = vmatprep.subr.mxu0 0.0
        %806 = vmatpush1.msra.mxu0 0.0
        %807 = vmatprep.subr.mxu0 0.0
        %808 = vmatpush1.msra.mxu0 0.0
        %809 = vmatprep.subr.mxu0 0.0
        %810 = vmatpush1.msra.mxu0 0.0
        %811 = vmatprep.mubr.f32.mxu0 0.0
        %812 = vmatmul.mubr.f32.gmra.mrb[0].mxu0 %v721
        %v813 = vpop.f32.mrb[0].mxu0
        %v814 = vadd.f32 0.0, %v813
        %v815 = vpop.f32.mrb[0].mxu0
        %816 = vmatprep.mubr.f32.mxu0 0.0
        %817 = vmatmul.mubr.f32.gmra.mrb[0].mxu0 %v724
        %v818 = vpop.f32.mrb[0].mxu0
        %v819 = vadd.f32 0.0, %v818
        %v820 = vpop.f32.mrb[0].mxu0
        %821 = vmatprep.mubr.f32.mxu0 0.0
        %822 = vmatmul.mubr.f32.gmra.mrb[0].mxu0 %v727
        %v823 = vpop.f32.mrb[0].mxu0
        %v824 = vadd.f32 0.0, %v823
        %v825 = vpop.f32.mrb[0].mxu0
        %826 = vmatprep.mubr.f32.mxu0 0.0
        %827 = vmatmul.mubr.f32.gmra.mrb[0].mxu0 %v730
        %v828 = vpop.f32.mrb[0].mxu0
        %v829 = vadd.f32 0.0, %v828
        %v830 = vpop.f32.mrb[0].mxu0
        %831 = vmatprep.mubr.f32.mxu0 0.0
        %832 = vmatmul.mubr.f32.gmra.mrb[0].mxu0 %v733
        %v833 = vpop.f32.mrb[0].mxu0
        %v834 = vadd.f32 0.0, %v833
        %v835 = vpop.f32.mrb[0].mxu0
        %836 = vmatprep.mubr.f32.mxu0 0.0
        %837 = vmatmul.mubr.f32.gmra.mrb[0].mxu0 %v736
        %v838 = vpop.f32.mrb[0].mxu0
        %v839 = vadd.f32 0.0, %v838
        %v840 = vpop.f32.mrb[0].mxu0
        %841 = vmatprep.mubr.f32.mxu0 0.0
        %842 = vmatmul.mubr.f32.gmra.mrb[0].mxu0 %v739
        %v843 = vpop.f32.mrb[0].mxu0
        %v844 = vadd.f32 0.0, %v843
        %v845 = vpop.f32.mrb[0].mxu0
        %846 = vmatprep.mubr.f32.mxu0 0.0
        %847 = vmatmul.mubr.f32.gmra.mrb[0].mxu0 %v742
        %v848 = vpop.f32.mrb[0].mxu0
        %v849 = vadd.f32 0.0, %v848
        %v850 = vpop.f32.mrb[0].mxu0
        %851 = vdwg.mxu0
        %v852 = vld [vmem:[#allocation4] sm:$0xff]
        %v853 = vld [vmem:[#allocation4 + $0x8] sm:$0xff]
        %v854 = vld [vmem:[#allocation4 + $0x10] sm:$0xff]
        %v855 = vld [vmem:[#allocation4 + $0x18] sm:$0xff]
        %v856 = vld [vmem:[#allocation4 + $0x20] sm:$0xff]
        %v857 = vld [vmem:[#allocation4 + $0x28] sm:$0xff]
        %v858 = vld [vmem:[#allocation4 + $0x30] sm:$0xff]
        %v859 = vld [vmem:[#allocation4 + $0x38] sm:$0xff]
        %v860 = vadd.f32 %v852, %v814
        %v861 = vadd.f32 %v853, %v819
        %v862 = vadd.f32 %v854, %v824
        %v863 = vadd.f32 %v855, %v829
        %v864 = vadd.f32 %v856, %v834
        %v865 = vadd.f32 %v857, %v839
        %v866 = vadd.f32 %v858, %v844
        %v867 = vadd.f32 %v859, %v849
        %868 = vst.msk [vmem:[#allocation4] sm:$0xff] %vm534, %v860
        %869 = vst.msk [vmem:[#allocation4 + $0x8] sm:$0xff] %vm534, %v861
        %870 = vst.msk [vmem:[#allocation4 + $0x10] sm:$0xff] %vm534, %v862
        %871 = vst.msk [vmem:[#allocation4 + $0x18] sm:$0xff] %vm534, %v863
        %872 = vst.msk [vmem:[#allocation4 + $0x20] sm:$0xff] %vm534, %v864
        %873 = vst.msk [vmem:[#allocation4 + $0x28] sm:$0xff] %vm534, %v865
        %874 = vst.msk [vmem:[#allocation4 + $0x30] sm:$0xff] %vm534, %v866
        %875 = vst.msk [vmem:[#allocation4 + $0x38] sm:$0xff] %vm534, %v867
        %v876 = vld [vmem:[#allocation4] sm:$0xff]
        %v877 = vld [vmem:[#allocation4 + $0x8] sm:$0xff]
        %v878 = vld [vmem:[#allocation4 + $0x10] sm:$0xff]
        %v879 = vld [vmem:[#allocation4 + $0x18] sm:$0xff]
        %v880 = vld [vmem:[#allocation4 + $0x20] sm:$0xff]
        %v881 = vld [vmem:[#allocation4 + $0x28] sm:$0xff]
        %v882 = vld [vmem:[#allocation4 + $0x30] sm:$0xff]
        %v883 = vld [vmem:[#allocation4 + $0x38] sm:$0xff]
        %v884 = vsel %vm534, %v876, 0.0
        %v885 = vsel %vm534, %v877, 0.0
        %v886 = vadd.f32 %v884, %v885
        %v887 = vsel %vm534, %v878, 0.0
        %v888 = vadd.f32 %v886, %v887
        %v889 = vsel %vm534, %v879, 0.0
        %v890 = vadd.f32 %v888, %v889
        %v891 = vsel %vm534, %v880, 0.0
        %v892 = vadd.f32 %v890, %v891
        %v893 = vsel %vm534, %v881, 0.0
        %v894 = vadd.f32 %v892, %v893
        %v895 = vsel %vm534, %v882, 0.0
        %v896 = vadd.f32 %v894, %v895
        %v897 = vsel %vm534, %v883, 0.0
        %v898 = vadd.f32 %v896, %v897
        %v899 = vrot.slane %v898, 4
        %v900 = vadd.f32 %v898, %v899
        %v901 = vrot.slane %v900, 2
        %v902 = vadd.f32 %v900, %v901
        %v903 = vrot.slane %v902, 1
        %v904 = vadd.f32 %v902, %v903
        %v905 = vmul.f32 %v904, 0.015625
        %v906 = vsub.f32 %v876, %v905
        %v907 = vsub.f32 %v877, %v905
        %v908 = vsub.f32 %v878, %v905
        %v909 = vsub.f32 %v879, %v905
        %v910 = vsub.f32 %v880, %v905
        %v911 = vsub.f32 %v881, %v905
        %v912 = vsub.f32 %v882, %v905
        %v913 = vsub.f32 %v883, %v905
        %vm914 = vcmask 57344
        %915 = vst.msk [vmem:[%s174] sm:$0x1] %vm914, %v905
        %v916 = vmul.f32 %v906, %v906
        %v917 = vmul.f32 %v907, %v907
        %v918 = vmul.f32 %v908, %v908
        %v919 = vmul.f32 %v909, %v909
        %v920 = vmul.f32 %v910, %v910
        %v921 = vmul.f32 %v911, %v911
        %v922 = vmul.f32 %v912, %v912
        %v923 = vmul.f32 %v913, %v913
        %v924 = vsel %vm534, %v916, 0.0
        %v925 = vsel %vm534, %v917, 0.0
        %v926 = vadd.f32 %v924, %v925
        %v927 = vsel %vm534, %v918, 0.0
        %v928 = vadd.f32 %v926, %v927
        %v929 = vsel %vm534, %v919, 0.0
        %v930 = vadd.f32 %v928, %v929
        %v931 = vsel %vm534, %v920, 0.0
        %v932 = vadd.f32 %v930, %v931
        %v933 = vsel %vm534, %v921, 0.0
        %v934 = vadd.f32 %v932, %v933
        %v935 = vsel %vm534, %v922, 0.0
        %v936 = vadd.f32 %v934, %v935
        %v937 = vsel %vm534, %v923, 0.0
        %v938 = vadd.f32 %v936, %v937
        %v939 = vrot.slane %v938, 4
        %v940 = vadd.f32 %v938, %v939
        %v941 = vrot.slane %v940, 2
        %v942 = vadd.f32 %v940, %v941
        %v943 = vrot.slane %v942, 1
        %v944 = vadd.f32 %v942, %v943
        %945 = vst.msk [vmem:[%s174 + $0x1] sm:$0x1] %vm914, %v944
        %946 = vst.msk [vmem:[%s167] sm:$0xff] %vm534, %v876
        %947 = vst.msk [vmem:[%s167 + $0x8] sm:$0xff] %vm534, %v877
        %948 = vst.msk [vmem:[%s167 + $0x10] sm:$0xff] %vm534, %v878
        %949 = vst.msk [vmem:[%s167 + $0x18] sm:$0xff] %vm534, %v879
        %950 = vst.msk [vmem:[%s167 + $0x20] sm:$0xff] %vm534, %v880
        %951 = vst.msk [vmem:[%s167 + $0x28] sm:$0xff] %vm534, %v881
        %952 = vst.msk [vmem:[%s167 + $0x30] sm:$0xff] %vm534, %v882
        %953 = vst.msk [vmem:[%s167 + $0x38] sm:$0xff] %vm534, %v883
        %s954 = sand.u32 %s76, 1
        %s955 = scalar_lea.sflag [#allocation6], %s954
        %s956 = sand.u32 %s76, 1
        %s957 = smul.addr %s956, 64
        %s958 = scalar_lea.vmem [#allocation5], %s957
        %s959 = sand.u32 %s102, 1
        %s960 = scalar_lea.sflag [#allocation8], %s959
        %s961 = sand.u32 %s102, 1
        %s962 = smul.addr %s961, 2
        %s963 = scalar_lea.vmem [#allocation7], %s962
        // Predicated region
        $region29: #{tpu_custom_call.1} parent=27 // pred_check
          %p964 = pneg %p86
        $region30: #{tpu_custom_call.1} parent=27 // pred_check_branch
          %966 = sbr.rel (%p964) target = $region32
        $region31: #{tpu_custom_call.1} parent=27 // pred_region
          %s968 = ssub.s32 1024, 1024
          %969 = vsyncadd %s955, %s968
          %s970 = smul.addr %s21, 8
          %s971 = smul.addr %s970, 128
          %s972 = scalar_lea.hbm %s2, %s971
          %s973 = sshll.u32 %s958, 4
          %s974 = int_to_ptr.vmem [resolvable:$true] %s973
          %979 = dma.vmem_to_hbm [thread:$0]  %s974, 1024, %s972, %s955, 128, 128, 8
        $region32: #{tpu_custom_call.1} parent=27 // pred_fallthru
          _
        // Predicated region
        $region33: #{tpu_custom_call.1} parent=27 // pred_check
          %p980 = pneg %p112
        $region34: #{tpu_custom_call.1} parent=27 // pred_check_branch
          %982 = sbr.rel (%p980) target = $region36
        $region35: #{tpu_custom_call.1} parent=27 // pred_region
          %s984 = ssub.s32 32, 32
          %985 = vsyncadd %s960, %s984
          %s986 = smul.addr %s21, 32
          %s987 = scalar_lea.hbm %s3, %s986
          %s989 = sshll.u32 %s963, 4
          %s990 = int_to_ptr.vmem [resolvable:$true] %s989
          %992 = dma.vmem_to_hbm [thread:$0]  %s990, 32, %s987, %s960
        $region36: #{tpu_custom_call.1} parent=27 // pred_fallthru
          _
      $region28: #{tpu_custom_call.1} parent=5 // pred_fallthru
        _
      %p993 = scmp.le.s32.totalorder 2, %s16
      // Predicated region
      $region37: #{tpu_custom_call.1} parent=5 // pred_check
        %p994 = pneg %p993
      $region38: #{tpu_custom_call.1} parent=5 // pred_check_branch
        %996 = sbr.rel (%p994) target = $region40
      $region39: #{tpu_custom_call.1} parent=5 // pred_region
        %s997 = ssub.s32 %s16, 2
        // Predicated region
        $region41: #{tpu_custom_call.1} parent=39 // pred_check
          %p998 = pneg %p92
        $region42: #{tpu_custom_call.1} parent=39 // pred_check_branch
          %1000 = sbr.rel (%p998) target = $region44
        $region43: #{tpu_custom_call.1} parent=39 // pred_region
          %s1001 = sand.u32 %s77, 1
          %s1002 = scalar_lea.sflag [#allocation6], %s1001
          %s1003 = sand.u32 %s77, 1
          %s1004 = smul.addr %s1003, 64
          %s1005 = scalar_lea.vmem [#allocation5], %s1004
          %1006 = dma.done %s1002, 1024
        $region44: #{tpu_custom_call.1} parent=39 // pred_fallthru
          _
        // Predicated region
        $region45: #{tpu_custom_call.1} parent=39 // pred_check
          %p1007 = pneg %p118
        $region46: #{tpu_custom_call.1} parent=39 // pred_check_branch
          %1009 = sbr.rel (%p1007) target = $region48
        $region47: #{tpu_custom_call.1} parent=39 // pred_region
          %s1010 = sand.u32 %s103, 1
          %s1011 = scalar_lea.sflag [#allocation8], %s1010
          %s1012 = sand.u32 %s103, 1
          %s1013 = smul.addr %s1012, 2
          %s1014 = scalar_lea.vmem [#allocation7], %s1013
          %1015 = dma.done %s1011, 32
        $region48: #{tpu_custom_call.1} parent=39 // pred_fallthru
          _
      $region40: #{tpu_custom_call.1} parent=5 // pred_fallthru
        _
    $region6: #{tpu_custom_call.1} parent=1 // loop_footer
      %s20 = sadd.s32 1, %s16
    $region7: #{tpu_custom_call.1} parent=1 // loop_footer_branch
      %15 = sbr.rel target = $region3
    $region8: #{tpu_custom_call.1} parent=1 // loop_exit
      _
    %1016 = vsyncpa [#allocation6], 1
    %s1017 = scalar_lea.sflag [#allocation6], 1
    %1018 = vsyncpa %s1017, 1
    %1019 = vsyncpa [#allocation8], 1
    %s1020 = scalar_lea.sflag [#allocation8], 1
    %1021 = vsyncpa %s1020, 1

</llo_original>
